<compile_context>
chip_gen: v5e
topology: v5e:2x2
jax: 0.10.0
libtpu: 0.0.40
codegen_flags: <defaults>
</compile_context>

<pallas_src>
import functools

import jax
import jax.numpy as jnp
from jax.experimental import pallas as pl
from jax.experimental.pallas import tpu as pltpu


def _blur_kernel(x_ref, o_ref, *, H, W):
    # x_ref / o_ref: (rows_tile, H, W); one row == one (n, c) plane.
    x = x_ref[...].astype(jnp.float32)

    # Border masks (broadcast over the row-tile axis).
    row = jax.lax.broadcasted_iota(jnp.int32, (1, H, W), 1)
    col = jax.lax.broadcasted_iota(jnp.int32, (1, H, W), 2)

    # Horizontal [1,2,1]: neighbours via cyclic lane rolls; zero the column
    # that wrapped around (this reproduces the conv's zero padding).
    h = 2.0 * x
    h = h + jnp.where(col == 0, 0.0, pltpu.roll(x, shift=1, axis=2))
    h = h + jnp.where(col == W - 1, 0.0, pltpu.roll(x, shift=W - 1, axis=2))

    # Vertical [1,2,1]: neighbours via cyclic sublane rolls; zero wrapped rows.
    v = 2.0 * h
    v = v + jnp.where(row == 0, 0.0, pltpu.roll(h, shift=1, axis=1))
    v = v + jnp.where(row == H - 1, 0.0, pltpu.roll(h, shift=H - 1, axis=1))

    # Single fused normalisation: (1/4) * (1/4) = 1/16.
    o_ref[...] = (v * 0.0625).astype(o_ref.dtype)


def blur(x):
    """Depthwise 3x3 [[1,2,1],[2,4,2],[1,2,1]]/16 blur with zero padding=1.

    x: (N, C, H, W). Returns (N, C, H, W), same dtype (bf16 stays bf16 in HBM).
    """
    N, C, H, W = x.shape
    NC = N * C
    xf = x.reshape(NC, H, W)  # contiguous reshape: no HBM copy

    itemsize = jnp.dtype(x.dtype).itemsize
    # Per-plane VMEM cost of one grid step: double-buffered in + out blocks at
    # the native dtype, plus ~4 live f32 temporaries inside the kernel body.
    per_row = H * W * (4 * itemsize + 4 * 4)
    budget = 8 * 1024 * 1024
    rows_tile = max(1, min(NC, budget // per_row))
    # Keep >= 4 grid steps (2 per TensorCore on v7x) whenever NC allows it so
    # the DMA pipeline overlaps and both cores get work.
    rows_tile = min(rows_tile, max(1, pl.cdiv(NC, 4)))
    grid = (pl.cdiv(NC, rows_tile),)

    # Scoped-VMEM limit: enough for the chosen tile, never above ~48 MiB so we
    # stay inside v7x's 64 MiB physical VMEM (v5e/v6e have 128 MiB).
    vmem_limit = int(
        min(48 * 1024 * 1024,
            max(32 * 1024 * 1024, rows_tile * per_row + (1 << 20))))

    out = pl.pallas_call(
        functools.partial(_blur_kernel, H=H, W=W),
        out_shape=jax.ShapeDtypeStruct((NC, H, W), x.dtype),
        grid_spec=pltpu.PrefetchScalarGridSpec(
            num_scalar_prefetch=0,
            grid=grid,
            in_specs=[pl.BlockSpec((rows_tile, H, W), lambda r: (r, 0, 0))],
            out_specs=pl.BlockSpec((rows_tile, H, W), lambda r: (r, 0, 0)),
        ),
        compiler_params=pltpu.CompilerParams(
            dimension_semantics=("parallel",),
            vmem_limit_bytes=vmem_limit,
        ),
    )(xf)
    return out.reshape(N, C, H, W)


# TODO(synk): only the forward pass is implemented; PyTorch's custom
# BlurFunctionBackward (blur of the gradient with the flipped kernel) would
# need a jax.custom_vjp wrapper reusing this same kernel.
# TODO(synk): for the very low-resolution StyleGAN stages (W < 128) the lane
# dim is under-utilised; packing several planes side-by-side along the lane
# axis would make those (tiny) layers lane-dense as well.


if __name__ == "__main__":
    key = jax.random.PRNGKey(0)
    N, C, H, W = 2, 4, 16, 16
    x = jax.random.normal(key, (N, C, H, W), dtype=jnp.float32)

    out = jax.block_until_ready(blur(x))

    # Reference: depthwise conv2d with the fixed normalized blur kernel
    # (exactly the PyTorch Blur.forward semantics).
    k = jnp.array([[1.0, 2.0, 1.0], [2.0, 4.0, 2.0], [1.0, 2.0, 1.0]],
                  jnp.float32)
    k = k / k.sum()
    w = jnp.tile(k[None, None], (C, 1, 1, 1))  # (C, 1, 3, 3), OIHW, groups=C
    ref = jax.lax.conv_general_dilated(
        x, w, window_strides=(1, 1), padding=((1, 1), (1, 1)),
        dimension_numbers=("NCHW", "OIHW", "NCHW"), feature_group_count=C)

    assert out.shape == (N, C, H, W)
    assert jnp.allclose(out, ref, atol=1e-5, rtol=1e-5)

    print("KERNEL_OK")
</pallas_src>

<mosaic_0001>
module attributes {stable_mosaic.version = 11 : i64} {
  func.func @_blur_kernel(%arg0: i32, %arg1: memref<2x16x16xf32, #tpu.memory_space<vmem>>, %arg2: memref<2x16x16xf32, #tpu.memory_space<vmem>>) attributes {dimension_semantics = [#tpu.dimension_semantics<parallel>], iteration_bounds = array<i64: 4>, scalar_prefetch = 0 : i64, scratch_operands = 0 : i64, tpu.core_type = #tpu.core_type<tc>, window_params = [{transform_indices = @transform_0, window_bounds = array<i64: 2, 16, 16>}, {transform_indices = @transform_1, window_bounds = array<i64: 2, 16, 16>}]} {
    %c0 = arith.constant 0 : index
    %c0_0 = arith.constant 0 : index
    %c0_1 = arith.constant 0 : index
    %0 = vector.load %arg1[%c0, %c0_0, %c0_1] : memref<2x16x16xf32, #tpu.memory_space<vmem>>, vector<2x16x16xf32>
    %1 = tpu.iota {dimensions = array<i32: 1>} : vector<1x16x16xi32>
    %2 = tpu.iota {dimensions = array<i32: 2>} : vector<1x16x16xi32>
    %cst = arith.constant 2.000000e+00 : f32
    %3 = vector.broadcast %cst : f32 to vector<2x16x16xf32>
    %4 = arith.mulf %3, %0 : vector<2x16x16xf32>
    %c0_i32 = arith.constant 0 : i32
    %5 = vector.broadcast %c0_i32 : i32 to vector<1x16x16xi32>
    %6 = arith.cmpi eq, %2, %5 : vector<1x16x16xi32>
    %c1_i32 = arith.constant 1 : i32
    %7 = tpu.dynamic_rotate %0 by %c1_i32 dim 2 : vector<2x16x16xf32>, i32 -> vector<2x16x16xf32>
    %cst_2 = arith.constant 0.000000e+00 : f32
    %8 = vector.shape_cast %6 : vector<1x16x16xi1> to vector<1x16x16xi1>
    %9 = vector.broadcast %8 : vector<1x16x16xi1> to vector<2x16x16xi1>
    %10 = vector.broadcast %cst_2 : f32 to vector<2x16x16xf32>
    %11 = arith.select %9, %10, %7 : vector<2x16x16xi1>, vector<2x16x16xf32>
    %12 = arith.addf %4, %11 : vector<2x16x16xf32>
    %c15_i32 = arith.constant 15 : i32
    %13 = vector.broadcast %c15_i32 : i32 to vector<1x16x16xi32>
    %14 = arith.cmpi eq, %2, %13 : vector<1x16x16xi32>
    %c15_i32_3 = arith.constant 15 : i32
    %15 = tpu.dynamic_rotate %0 by %c15_i32_3 dim 2 : vector<2x16x16xf32>, i32 -> vector<2x16x16xf32>
    %cst_4 = arith.constant 0.000000e+00 : f32
    %16 = vector.shape_cast %14 : vector<1x16x16xi1> to vector<1x16x16xi1>
    %17 = vector.broadcast %16 : vector<1x16x16xi1> to vector<2x16x16xi1>
    %18 = vector.broadcast %cst_4 : f32 to vector<2x16x16xf32>
    %19 = arith.select %17, %18, %15 : vector<2x16x16xi1>, vector<2x16x16xf32>
    %20 = arith.addf %12, %19 : vector<2x16x16xf32>
    %cst_5 = arith.constant 2.000000e+00 : f32
    %21 = vector.broadcast %cst_5 : f32 to vector<2x16x16xf32>
    %22 = arith.mulf %21, %20 : vector<2x16x16xf32>
    %c0_i32_6 = arith.constant 0 : i32
    %23 = vector.broadcast %c0_i32_6 : i32 to vector<1x16x16xi32>
    %24 = arith.cmpi eq, %1, %23 : vector<1x16x16xi32>
    %c1_i32_7 = arith.constant 1 : i32
    %25 = tpu.dynamic_rotate %20 by %c1_i32_7 dim 1 : vector<2x16x16xf32>, i32 -> vector<2x16x16xf32>
    %cst_8 = arith.constant 0.000000e+00 : f32
    %26 = vector.shape_cast %24 : vector<1x16x16xi1> to vector<1x16x16xi1>
    %27 = vector.broadcast %26 : vector<1x16x16xi1> to vector<2x16x16xi1>
    %28 = vector.broadcast %cst_8 : f32 to vector<2x16x16xf32>
    %29 = arith.select %27, %28, %25 : vector<2x16x16xi1>, vector<2x16x16xf32>
    %30 = arith.addf %22, %29 : vector<2x16x16xf32>
    %c15_i32_9 = arith.constant 15 : i32
    %31 = vector.broadcast %c15_i32_9 : i32 to vector<1x16x16xi32>
    %32 = arith.cmpi eq, %1, %31 : vector<1x16x16xi32>
    %c15_i32_10 = arith.constant 15 : i32
    %33 = tpu.dynamic_rotate %20 by %c15_i32_10 dim 1 : vector<2x16x16xf32>, i32 -> vector<2x16x16xf32>
    %cst_11 = arith.constant 0.000000e+00 : f32
    %34 = vector.shape_cast %32 : vector<1x16x16xi1> to vector<1x16x16xi1>
    %35 = vector.broadcast %34 : vector<1x16x16xi1> to vector<2x16x16xi1>
    %36 = vector.broadcast %cst_11 : f32 to vector<2x16x16xf32>
    %37 = arith.select %35, %36, %33 : vector<2x16x16xi1>, vector<2x16x16xf32>
    %38 = arith.addf %30, %37 : vector<2x16x16xf32>
    %cst_12 = arith.constant 6.250000e-02 : f32
    %39 = vector.broadcast %cst_12 : f32 to vector<2x16x16xf32>
    %40 = arith.mulf %38, %39 : vector<2x16x16xf32>
    %c0_13 = arith.constant 0 : index
    %c0_14 = arith.constant 0 : index
    %c0_15 = arith.constant 0 : index
    %41 = vector.load %arg2[%c0_13, %c0_14, %c0_15] : memref<2x16x16xf32, #tpu.memory_space<vmem>>, vector<2x16x16xf32>
    tpu.vector_store %arg2[%c0_13, %c0_14, %c0_15], %40 {strides = array<i32>} : memref<2x16x16xf32, #tpu.memory_space<vmem>>, vector<2x16x16xf32>,
    return
  }
  func.func @transform_0(%arg0: i32) -> (i32, i32, i32) {
    %c0_i32 = arith.constant 0 : i32
    %c0_i32_0 = arith.constant 0 : i32
    %c0_i32_1 = arith.constant 0 : i32
    return %arg0, %c0_i32, %c0_i32_0 : i32, i32, i32
  }
  func.func @transform_1(%arg0: i32) -> (i32, i32, i32) {
    %c0_i32 = arith.constant 0 : i32
    %c0_i32_0 = arith.constant 0 : i32
    %c0_i32_1 = arith.constant 0 : i32
    return %arg0, %c0_i32, %c0_i32_0 : i32, i32, i32
  }
}

</mosaic_0001>

<llo_original>
// kernel: tpu_custom_call.1
$region0: #{tpu_custom_call.1}
  #allocation0 [shape = 'u32[]', space=smem, size = 0x4, offset = 0x4, fixed_abs, tag = 'smem constant byte address 0x4 - core index']
  #allocation1 [shape = 'u32[72,128]{1,0:T(1,128)}', space=vmem, size = 0x9000, scoped, tag = 'internal scratch']
  %s0 = inlined_call_operand.hbm [shape: f32[8,16,16], index: 0, kind: input, shape index: {}]
  %s1 = inlined_call_operand.hbm [shape: f32[8,16,16], index: 1, kind: output, shape index: {}]
  %s2 = sld [smem:[#allocation0]]
  $region41: #{tpu_custom_call.1} parent=0
    _
  %s4 = ssub.s32 1, %s2
  %s5 = scalar_select 0, %s4, %s2
  $region1: #{tpu_custom_call.1} parent=0
    #allocation2 [shape = 'u8[32768]{0}', space=vmem, size = 0x8000, scoped, tag = 'input window, operand 0']
    #allocation3 [shape = 's32[2]{0}', space=sflag, size = 0x8, scoped, tag = 'scoped memory for tpu_custom_call.1']
    #allocation4 [shape = 's32[2]{0}', space=sflag, size = 0x8, scoped, tag = 'scoped memory for tpu_custom_call.1']
    #allocation5 [shape = 'u8[32768]{0}', space=vmem, size = 0x8000, scoped, tag = 'output window, operand 0']
    %6 = vsyncpa [#allocation3], 0
    %s7 = scalar_lea.sflag [#allocation3], 1
    %8 = vsyncpa %s7, 0
    %9 = vsyncpa [#allocation4], 0
    %s10 = scalar_lea.sflag [#allocation4], 1
    %11 = vsyncpa %s10, 0
    loop: start=0, step=1, limit=6
    $region2: #{tpu_custom_call.1} parent=1 // loop_pre_header
      _
    $region3: #{tpu_custom_call.1} parent=1 // loop_header
      %s13 = sphi 0, %s17
      %p14 = scmp.ge.s32.totalorder %s13, 6
      %s23 = sphi 0, %s25
      %s26 = sphi 0, %s23
      %s27 = sphi 0, %s26
      %s43 = sphi 0, %s27
      %s49 = sphi 0, %s51
      %s52 = sphi 0, %s49
      %s53 = sphi 0, %s52
      %s69 = sphi 0, %s53
    $region4: #{tpu_custom_call.1} parent=1 // loop_header_branch
      %16 = sbr.rel (%p14) target = $region8
    $region5: #{tpu_custom_call.1} parent=1 // loop_body
      %s18 = ssub.s32 %s13, 1
      %s19 = ssub.s32 %s13, 2
      %s20 = sadd.s32 %s13, 1
      %s21 = ssub.s32 %s13, %s20
      %p22 = scmp.eq.s32.totalorder %s21, 0
      %s24 = sadd.s32 %s23, 1
      %s25 = scalar_select %p22, %s23, %s24
      %p28 = pneg %p22
      %p29 = scmp.eq.s32.totalorder %s13, 3
      %p30 = por %p28, %p29
      %p31 = scmp.ne.s32.totalorder %s23, %s26
      %p32 = scmp.eq.s32.totalorder %s13, 0
      %p33 = por %p31, %p32
      %p34 = scmp.ne.s32.totalorder %s23, %s26
      %p35 = scmp.eq.s32.totalorder %s18, 3
      %p36 = por %p34, %p35
      %p37 = scmp.ne.s32.totalorder %s26, %s27
      %p38 = scmp.eq.s32.totalorder %s18, 0
      %p39 = por %p37, %p38
      %p40 = scmp.ne.s32.totalorder %s26, %s27
      %p41 = scmp.eq.s32.totalorder %s19, 3
      %p42 = por %p40, %p41
      %p44 = scmp.ne.s32.totalorder %s27, %s43
      %p45 = scmp.eq.s32.totalorder %s19, 0
      %p46 = por %p44, %p45
      %s47 = ssub.s32 %s13, %s20
      %p48 = scmp.eq.s32.totalorder %s47, 0
      %s50 = sadd.s32 %s49, 1
      %s51 = scalar_select %p48, %s49, %s50
      %p54 = pneg %p48
      %p55 = scmp.eq.s32.totalorder %s13, 3
      %p56 = por %p54, %p55
      %p57 = scmp.ne.s32.totalorder %s49, %s52
      %p58 = scmp.eq.s32.totalorder %s13, 0
      %p59 = por %p57, %p58
      %p60 = scmp.ne.s32.totalorder %s49, %s52
      %p61 = scmp.eq.s32.totalorder %s18, 3
      %p62 = por %p60, %p61
      %p63 = scmp.ne.s32.totalorder %s52, %s53
      %p64 = scmp.eq.s32.totalorder %s18, 0
      %p65 = por %p63, %p64
      %p66 = scmp.ne.s32.totalorder %s52, %s53
      %p67 = scmp.eq.s32.totalorder %s19, 3
      %p68 = por %p66, %p67
      %p70 = scmp.ne.s32.totalorder %s53, %s69
      %p71 = scmp.eq.s32.totalorder %s19, 0
      %p72 = por %p70, %p71
      %p73 = scmp.le.s32.totalorder 1, %s13
      %p74 = scmp.lt.s32.totalorder %s13, 5
      %p75 = pnand %p73, %p74
      %p76 = pneg %p75
      // Predicated region
      $region9: #{tpu_custom_call.1} parent=5 // pred_check
        _
      $region10: #{tpu_custom_call.1} parent=5 // pred_check_branch
        %78 = sbr.rel (%p75) target = $region12
      $region11: #{tpu_custom_call.1} parent=5 // pred_region
        %s79 = ssub.s32 %s13, 1
      $region12: #{tpu_custom_call.1} parent=5 // pred_fallthru
        _
      %p80 = scmp.lt.s32.totalorder %s13, 4
      // Predicated region
      $region13: #{tpu_custom_call.1} parent=5 // pred_check
        %p81 = pneg %p80
      $region14: #{tpu_custom_call.1} parent=5 // pred_check_branch
        %83 = sbr.rel (%p81) target = $region16
      $region15: #{tpu_custom_call.1} parent=5 // pred_region
        // Predicated region
        $region17: #{tpu_custom_call.1} parent=15 // pred_check
          %p84 = pneg %p33
        $region18: #{tpu_custom_call.1} parent=15 // pred_check_branch
          %86 = sbr.rel (%p84) target = $region20
        $region19: #{tpu_custom_call.1} parent=15 // pred_region
          %s87 = sand.u32 %s23, 1
          %s88 = scalar_lea.sflag [#allocation3], %s87
          %s89 = sand.u32 %s23, 1
          %s90 = smul.addr %s89, 32
          %s91 = scalar_lea.vmem [#allocation2], %s90
          %s92 = smul.u32 2, %s13
          %94 = vsyncadd %s88, 0
          %s95 = smul.addr %s92, 2
          %s96 = smul.addr %s95, 8
          %s97 = scalar_lea.hbm %s0, %s96
          %s98 = sshll.u32 %s97, 4
          %s99 = int_to_ptr.hbm [resolvable:$true] %s98
          %s100 = sshll.u32 %s91, 4
          %s101 = int_to_ptr.vmem [resolvable:$true] %s100
          %106 = dma.hbm_to_vmem [thread:$0]  %s99, 512, %s101, %s88, 128, 128, 8
        $region20: #{tpu_custom_call.1} parent=15 // pred_fallthru
          _
      $region16: #{tpu_custom_call.1} parent=5 // pred_fallthru
        _
      %p107 = scmp.le.s32.totalorder 1, %s13
      %p108 = scmp.lt.s32.totalorder %s13, 5
      %p109 = pnand %p107, %p108
      %p110 = pneg %p109
      // Predicated region
      $region21: #{tpu_custom_call.1} parent=5 // pred_check
        _
      $region22: #{tpu_custom_call.1} parent=5 // pred_check_branch
        %112 = sbr.rel (%p109) target = $region24
      $region23: #{tpu_custom_call.1} parent=5 // pred_region
        %s113 = ssub.s32 %s13, 1
        %s114 = sand.u32 %s26, 1
        %s115 = scalar_lea.sflag [#allocation3], %s114
        %s116 = sand.u32 %s26, 1
        %s117 = smul.addr %s116, 32
        %s118 = scalar_lea.vmem [#allocation2], %s117
        // Predicated region
        $region25: #{tpu_custom_call.1} parent=23 // pred_check
          %p119 = pneg %p39
        $region26: #{tpu_custom_call.1} parent=23 // pred_check_branch
          %121 = sbr.rel (%p119) target = $region28
        $region27: #{tpu_custom_call.1} parent=23 // pred_region
          %123 = dma.done %s115, 512
        $region28: #{tpu_custom_call.1} parent=23 // pred_fallthru
          _
        %s124 = sand.u32 %s26, 1
        %s125 = scalar_lea.sflag [#allocation3], %s124
        %s126 = sand.u32 %s26, 1
        %s127 = smul.addr %s126, 32
        %s128 = scalar_lea.vmem [#allocation2], %s127
        %p129 = pneg %p39
        %p130 = pneg %p36
        %p131 = pneg %p65
        %p132 = pneg %p62
        %s133 = sand.u32 %s52, 1
        %s134 = scalar_lea.sflag [#allocation4], %s133
        %s135 = sand.u32 %s52, 1
        %s136 = smul.addr %s135, 32
        %s137 = scalar_lea.vmem [#allocation5], %s136
        %s138 = smul.u32 2, %s18
        %s139 = smul.u32 2, %s18
        %v140 = vld [vmem:[%s118] sm:$0xff]
        %v141 = vld [vmem:[%s118 + $0x8] sm:$0xff]
        %v142 = vld [vmem:[%s118 + $0x10] sm:$0xff]
        %v143 = vld [vmem:[%s118 + $0x18] sm:$0xff]
        %v144 = vlaneseq
        %v145 = vshrl.u32 %v144, 7
        %v146 = vadd.s32 %v145, 8
        %v147 = vlaneseq
        %v148 = vand.u32 %v147, 127
        %v149 = vmul.f32 %v140, 2.0
        %v150 = vmul.f32 %v141, 2.0
        %v151 = vmul.f32 %v142, 2.0
        %v152 = vmul.f32 %v143, 2.0
        %vm153 = vcmp.eq.s32.totalorder %v148, 0
        %vm154 = vcmask 1047680
        %155 = vrot.lane.b32.xlu0 %v140, 16
        %v156 = vpop.permute.xlu0 %155
        %v157 = vsel %vm154, %v156, %v140
        %158 = vrot.lane.b32.xlu0 %v141, 16
        %v159 = vpop.permute.xlu0 %158
        %v160 = vsel %vm154, %v159, %v141
        %161 = vrot.lane.b32.xlu0 %v142, 16
        %v162 = vpop.permute.xlu0 %161
        %v163 = vsel %vm154, %v162, %v142
        %164 = vrot.lane.b32.xlu0 %v143, 16
        %v165 = vpop.permute.xlu0 %164
        %v166 = vsel %vm154, %v165, %v143
        %167 = vrot.lane.b32.xlu0 %v157, 16
        %v168 = vpop.permute.xlu0 %167
        %169 = vrot.lane.b32.xlu0 %v160, 16
        %v170 = vpop.permute.xlu0 %169
        %171 = vrot.lane.b32.xlu0 %v163, 16
        %v172 = vpop.permute.xlu0 %171
        %173 = vrot.lane.b32.xlu0 %v166, 16
        %v174 = vpop.permute.xlu0 %173
        %v175 = vsel %vm154, %v168, %v140
        %v176 = vsel %vm154, %v170, %v141
        %v177 = vsel %vm154, %v172, %v142
        %v178 = vsel %vm154, %v174, %v143
        %v179 = vsel %vm153, 1, 0
        %vm180 = vcmp.eq.s32.totalorder %v179, 1
        %185 = vrot.lane.b32.xlu0 %v175, 113
        %v186 = vpop.permute.xlu0 %185
        %187 = vrot.lane.b32.xlu0 %v176, 113
        %v188 = vpop.permute.xlu0 %187
        %189 = vrot.lane.b32.xlu0 %v177, 113
        %v190 = vpop.permute.xlu0 %189
        %191 = vrot.lane.b32.xlu0 %v178, 113
        %v192 = vpop.permute.xlu0 %191
        %v197 = vsel %vm180, 0.0, %v186
        %v198 = vsel %vm180, 0.0, %v188
        %v199 = vsel %vm180, 0.0, %v190
        %v200 = vsel %vm180, 0.0, %v192
        %v201 = vadd.f32 %v149, %v197
        %v202 = vadd.f32 %v150, %v198
        %v203 = vadd.f32 %v151, %v199
        %v204 = vadd.f32 %v152, %v200
        %vm205 = vcmp.eq.s32.totalorder %v148, 15
        %v206 = vsel %vm205, 1, 0
        %vm207 = vcmp.eq.s32.totalorder %v206, 1
        %208 = vrot.lane.b32.xlu0 %v175, 127
        %v209 = vpop.permute.xlu0 %208
        %210 = vrot.lane.b32.xlu0 %v176, 127
        %v211 = vpop.permute.xlu0 %210
        %212 = vrot.lane.b32.xlu0 %v177, 127
        %v213 = vpop.permute.xlu0 %212
        %214 = vrot.lane.b32.xlu0 %v178, 127
        %v215 = vpop.permute.xlu0 %214
        %v220 = vsel %vm207, 0.0, %v209
        %v221 = vsel %vm207, 0.0, %v211
        %v222 = vsel %vm207, 0.0, %v213
        %v223 = vsel %vm207, 0.0, %v215
        %v224 = vadd.f32 %v201, %v220
        %v225 = vadd.f32 %v202, %v221
        %v226 = vadd.f32 %v203, %v222
        %v227 = vadd.f32 %v204, %v223
        %v228 = vmul.f32 %v224, 2.0
        %v229 = vmul.f32 %v225, 2.0
        %v230 = vmul.f32 %v226, 2.0
        %v231 = vmul.f32 %v227, 2.0
        %vm232 = vcmp.eq.s32.totalorder %v145, 0
        %vm233 = vcmp.eq.s32.totalorder %v146, 0
        %v234 = vrot.slane %v224, 7
        %v235 = vrot.slane %v226, 7
        %v236 = vrot.slane %v225, 7
        %v237 = vrot.slane %v227, 7
        %vm238 = vcmp.lt.s32.totalorder %v145, 1
        %v239 = vsel %vm238, %v234, %v236
        %v240 = vsel %vm238, %v235, %v237
        %v241 = vsel %vm238, %v236, %v234
        %v242 = vsel %vm238, %v237, %v235
        %v243 = vsel %vm232, 1, 0
        %v244 = vsel %vm233, 1, 0
        %vm245 = vcmp.eq.s32.totalorder %v243, 1
        %vm246 = vcmp.eq.s32.totalorder %v244, 1
        %v247 = vsel %vm245, 0.0, %v241
        %v248 = vsel %vm246, 0.0, %v239
        %v249 = vsel %vm245, 0.0, %v242
        %v250 = vsel %vm246, 0.0, %v240
        %v251 = vadd.f32 %v228, %v247
        %v252 = vadd.f32 %v229, %v248
        %v253 = vadd.f32 %v230, %v249
        %v254 = vadd.f32 %v231, %v250
        %vm255 = vcmp.eq.s32.totalorder %v145, 15
        %vm256 = vcmp.eq.s32.totalorder %v146, 15
        %v257 = vrot.slane %v224, 1
        %v258 = vrot.slane %v226, 1
        %v259 = vrot.slane %v225, 1
        %v260 = vrot.slane %v227, 1
        %vm261 = vcmp.lt.s32.totalorder %v145, 7
        %v262 = vsel %vm261, %v257, %v259
        %v263 = vsel %vm261, %v258, %v260
        %v264 = vsel %vm261, %v259, %v257
        %v265 = vsel %vm261, %v260, %v258
        %v266 = vsel %vm255, 1, 0
        %v267 = vsel %vm256, 1, 0
        %vm268 = vcmp.eq.s32.totalorder %v266, 1
        %vm269 = vcmp.eq.s32.totalorder %v267, 1
        %v270 = vsel %vm268, 0.0, %v262
        %v271 = vsel %vm269, 0.0, %v264
        %v272 = vsel %vm268, 0.0, %v263
        %v273 = vsel %vm269, 0.0, %v265
        %v274 = vadd.f32 %v251, %v270
        %v275 = vadd.f32 %v252, %v271
        %v276 = vadd.f32 %v253, %v272
        %v277 = vadd.f32 %v254, %v273
        %v278 = vmul.f32 %v274, 0.0625
        %v279 = vmul.f32 %v275, 0.0625
        %v280 = vmul.f32 %v276, 0.0625
        %v281 = vmul.f32 %v277, 0.0625
        %vm282 = vcmask 130048
        %283 = vst.msk [vmem:[%s137] sm:$0xff] %vm282, %v278
        %284 = vst.msk [vmem:[%s137 + $0x8] sm:$0xff] %vm282, %v279
        %285 = vst.msk [vmem:[%s137 + $0x10] sm:$0xff] %vm282, %v280
        %286 = vst.msk [vmem:[%s137 + $0x18] sm:$0xff] %vm282, %v281
        %s287 = sand.u32 %s52, 1
        %s288 = scalar_lea.sflag [#allocation4], %s287
        %s289 = sand.u32 %s52, 1
        %s290 = smul.addr %s289, 32
        %s291 = scalar_lea.vmem [#allocation5], %s290
        // Predicated region
        $region29: #{tpu_custom_call.1} parent=23 // pred_check
          %p292 = pneg %p62
        $region30: #{tpu_custom_call.1} parent=23 // pred_check_branch
          %294 = sbr.rel (%p292) target = $region32
        $region31: #{tpu_custom_call.1} parent=23 // pred_region
          %s295 = smul.u32 2, %s18
          %297 = vsyncadd %s288, 0
          %s298 = smul.addr %s295, 2
          %s299 = smul.addr %s298, 8
          %s300 = scalar_lea.hbm %s1, %s299
          %s301 = sshll.u32 %s291, 4
          %s302 = int_to_ptr.vmem [resolvable:$true] %s301
          %s303 = sshll.u32 %s300, 4
          %s304 = int_to_ptr.hbm [resolvable:$true] %s303
          %309 = dma.vmem_to_hbm [thread:$0]  %s302, 512, %s304, %s288, 128, 128, 8
        $region32: #{tpu_custom_call.1} parent=23 // pred_fallthru
          _
      $region24: #{tpu_custom_call.1} parent=5 // pred_fallthru
        _
      %p310 = scmp.le.s32.totalorder 2, %s13
      // Predicated region
      $region33: #{tpu_custom_call.1} parent=5 // pred_check
        %p311 = pneg %p310
      $region34: #{tpu_custom_call.1} parent=5 // pred_check_branch
        %313 = sbr.rel (%p311) target = $region36
      $region35: #{tpu_custom_call.1} parent=5 // pred_region
        %s314 = ssub.s32 %s13, 2
        // Predicated region
        $region37: #{tpu_custom_call.1} parent=35 // pred_check
          %p315 = pneg %p68
        $region38: #{tpu_custom_call.1} parent=35 // pred_check_branch
          %317 = sbr.rel (%p315) target = $region40
        $region39: #{tpu_custom_call.1} parent=35 // pred_region
          %s318 = sand.u32 %s53, 1
          %s319 = scalar_lea.sflag [#allocation4], %s318
          %s320 = sand.u32 %s53, 1
          %s321 = smul.addr %s320, 32
          %s322 = scalar_lea.vmem [#allocation5], %s321
          %324 = dma.done %s319, 512
        $region40: #{tpu_custom_call.1} parent=35 // pred_fallthru
          _
      $region36: #{tpu_custom_call.1} parent=5 // pred_fallthru
        _
    $region6: #{tpu_custom_call.1} parent=1 // loop_footer
      %s17 = sadd.s32 1, %s13
    $region7: #{tpu_custom_call.1} parent=1 // loop_footer_branch
      %12 = sbr.rel target = $region3
    $region8: #{tpu_custom_call.1} parent=1 // loop_exit
      _
    %325 = vsyncpa [#allocation3], 1
    %s326 = scalar_lea.sflag [#allocation3], 1
    %327 = vsyncpa %s326, 1
    %328 = vsyncpa [#allocation4], 1
    %s329 = scalar_lea.sflag [#allocation4], 1
    %330 = vsyncpa %s329, 1

</llo_original>
